<compile_context>
chip_gen: v5e
topology: v5e:2x2
jax: 0.10.0
libtpu: 0.0.40
codegen_flags: <defaults>
</compile_context>

<pallas_src>
import jax
import jax.numpy as jnp
from jax.experimental import pallas as pl
from jax.experimental.pallas import tpu as pltpu


def _conv_row_kernel(x_ref, w_ref, b_ref, o_ref):
    """One (batch element, row tile) step of the convolution.

    x_ref: (Hp, Wp*Cin)          full padded image rows for this batch element
    w_ref: (KH, Wp*Cin, W*Cout)  per-kh row-conv matrices (width taps folded in)
    b_ref: (1, W*Cout)           bias tiled over W (lane-dense)
    o_ref: (H_tile, W*Cout)      lane-dense output rows
    """
    h_tile, wc = o_ref.shape
    kh_total = w_ref.shape[0]

    # Aligned start row of this tile inside the padded image.
    h0 = pl.multiple_of(pl.program_id(1) * h_tile, h_tile)

    # Accumulator starts as the (broadcast) bias -- saves a full-tile add pass.
    acc = jnp.broadcast_to(b_ref[...], (h_tile, wc)).astype(jnp.float32)

    # KH is tiny & static -> unrolled at trace time.  Each iteration is one
    # sublane-window load (no lane relayout, no reshape) + one MXU matmul.
    for kh in range(kh_total):
        rows = x_ref[pl.ds(h0 + kh, h_tile), :]            # (H_tile, Wp*Cin)
        acc = acc + jnp.dot(rows, w_ref[kh],
                            preferred_element_type=jnp.float32)

    o_ref[...] = acc.astype(o_ref.dtype)


def _build_row_conv_matrices(weight_oihw, W, pad):
    """Fold the width taps + channel contraction into KH dense matrices.

    Returns B with shape (KH, Wp*Cin, W*Cout) such that
        out[h, wo*Cout + co] = sum_kh  x_pad_row[h + kh] @ B[kh]
    where x_pad_row[r] is row r of the padded NHWC input flattened over (W, Cin).
    """
    Cout, Cin, KH, KW = weight_oihw.shape
    Wp = W + 2 * pad
    w_hwio = jnp.transpose(weight_oihw, (2, 3, 1, 0))        # (KH, KW, Cin, Cout)

    wi = jnp.arange(Wp)[:, None]                             # padded input col
    wo = jnp.arange(W)[None, :]                              # output col
    kw = wi - wo                                             # tap index (Wp, W)
    valid = (kw >= 0) & (kw < KW)
    kw_c = jnp.clip(kw, 0, KW - 1)

    # scat[kh, wi, wo, ci, co] = w_hwio[kh, wi-wo, ci, co] if valid else 0
    scat = jnp.where(valid[None, :, :, None, None],
                     w_hwio[:, kw_c, :, :], 0.0)             # (KH, Wp, W, Cin, Cout)
    # -> (KH, Wp, Cin, W, Cout) -> (KH, Wp*Cin, W*Cout)
    return jnp.transpose(scat, (0, 1, 3, 2, 4)).reshape(KH, Wp * Cin, W * Cout)


def _pick_h_tile(H):
    """Largest standard row-tile dividing H (multiple of 8), else full H."""
    for cand in (512, 256, 128, 64, 32, 16, 8):
        if H % cand == 0:
            return cand
    return H


def encoder_preprocessing_block(x_nchw, weight_oihw, bias, kernel_size,
                                h_tile=None):
    """Forward pass of EncoderPreProcessingBlock.

    x_nchw:      (N, Cin, H, W)      float32 (PyTorch NCHW convention)
    weight_oihw: (Cout, Cin, KH, KW) float32 (PyTorch Conv2d weight layout)
    bias:        (Cout,)             float32
    returns:     (N, Cout, H, W)     float32 (stride 1, "same" padding)
    """
    assert kernel_size % 2 == 1, (
        "same-padding path assumes odd kernel_size "
        "(PyTorch Conv2d with padding=k//2 changes output size for even k)")
    N, Cin, H, W = x_nchw.shape
    Cout = weight_oihw.shape[0]
    KH = KW = kernel_size
    pad = kernel_size // 2
    Hp, Wp = H + 2 * pad, W + 2 * pad

    if h_tile is None:
        h_tile = _pick_h_tile(H)
    assert H % h_tile == 0 and (h_tile % 8 == 0 or h_tile == H)
    num_h_tiles = H // h_tile

    # ---- layout glue (XLA fuses transpose+pad into one copy; reshape is free)
    x_nhwc = jnp.transpose(x_nchw, (0, 2, 3, 1))                      # NHWC
    x_pad = jnp.pad(x_nhwc, ((0, 0), (pad, pad), (pad, pad), (0, 0)))
    x_rows = x_pad.reshape(N, Hp, Wp * Cin)                           # rows flat over (W, Cin)

    w_mat = _build_row_conv_matrices(weight_oihw, W, pad)             # (KH, Wp*Cin, W*Cout)
    bias_row = jnp.tile(bias, W).reshape(1, W * Cout)                 # lane-dense bias

    flops = 2 * N * H * KH * (Wp * Cin) * (W * Cout)
    bytes_accessed = 4 * (N * Hp * Wp * Cin
                          + KH * Wp * Cin * W * Cout
                          + W * Cout
                          + N * H * W * Cout)

    out2d = pl.pallas_call(
        _conv_row_kernel,
        out_shape=jax.ShapeDtypeStruct((N, H, W * Cout), x_nchw.dtype),
        grid=(N, num_h_tiles),
        in_specs=[
            # full padded image for batch element n; kept resident across j
            pl.BlockSpec((None, Hp, Wp * Cin), lambda n, j: (n, 0, 0)),
            # row-conv matrices: constant across the whole grid
            pl.BlockSpec((KH, Wp * Cin, W * Cout), lambda n, j: (0, 0, 0)),
            pl.BlockSpec((1, W * Cout), lambda n, j: (0, 0)),
        ],
        out_specs=pl.BlockSpec((None, h_tile, W * Cout), lambda n, j: (n, j, 0)),
        compiler_params=pltpu.CompilerParams(
            dimension_semantics=("parallel", "parallel")),
        cost_estimate=pl.CostEstimate(
            flops=flops, transcendentals=0, bytes_accessed=bytes_accessed),
    )(x_rows, w_mat, bias_row)

    # back to the PyTorch NCHW interface
    out_nhwc = out2d.reshape(N, H, W, Cout)
    return jnp.transpose(out_nhwc, (0, 3, 1, 2))


if __name__ == "__main__":
    # Small deterministic config consistent with the module.
    batch, in_channels, num_filters, spatial, kernel_size = 2, 4, 8, 16, 3

    key = jax.random.PRNGKey(0)
    kx, kw, kb = jax.random.split(key, 3)
    x = jax.random.normal(kx, (batch, in_channels, spatial, spatial),
                          dtype=jnp.float32)
    weight = 0.1 * jax.random.normal(
        kw, (num_filters, in_channels, kernel_size, kernel_size),
        dtype=jnp.float32)
    bias = 0.1 * jax.random.normal(kb, (num_filters,), dtype=jnp.float32)

    # h_tile=8 -> grid (2, 2): exercises the pipelined multi-step grid.
    out = encoder_preprocessing_block(x, weight, bias, kernel_size, h_tile=8)
    out = jax.block_until_ready(out)

    # Reference: XLA conv (same semantics as torch.nn.Conv2d, stride 1,
    # padding = kernel_size // 2) + bias.
    ref = jax.lax.conv_general_dilated(
        x, weight, window_strides=(1, 1),
        padding=[(kernel_size // 2, kernel_size // 2)] * 2,
        dimension_numbers=("NCHW", "OIHW", "NCHW"),
    ) + bias.reshape(1, num_filters, 1, 1)

    assert out.shape == (batch, num_filters, spatial, spatial)
    assert jnp.allclose(out, ref, atol=1e-4, rtol=1e-4)

    print("KERNEL_OK")
</pallas_src>

<mosaic_0001>
module attributes {stable_mosaic.version = 11 : i64} {
  func.func @_conv_row_kernel(%arg0: i32, %arg1: i32, %arg2: memref<1x18x72xf32, #tpu.memory_space<vmem>>, %arg3: memref<3x72x128xf32, #tpu.memory_space<vmem>>, %arg4: memref<1x128xf32, #tpu.memory_space<vmem>>, %arg5: memref<1x8x128xf32, #tpu.memory_space<vmem>>) attributes {dimension_semantics = [#tpu.dimension_semantics<parallel>, #tpu.dimension_semantics<parallel>], iteration_bounds = array<i64: 2, 2>, scalar_prefetch = 0 : i64, scratch_operands = 0 : i64, tpu.core_type = #tpu.core_type<tc>, window_params = [{transform_indices = @transform_0, window_bounds = array<i64: 1, 18, 72>}, {pipeline_mode = #tpu.pipeline_mode<synchronous>, transform_indices = @transform_1, window_bounds = array<i64: 3, 72, 128>}, {pipeline_mode = #tpu.pipeline_mode<synchronous>, transform_indices = @transform_2, window_bounds = array<i64: 1, 128>}, {transform_indices = @transform_3, window_bounds = array<i64: 1, 8, 128>}]} {
    %c8_i32 = arith.constant 8 : i32
    %0 = arith.muli %arg1, %c8_i32 : i32
    %1 = tpu.assume_multiple %0, 8 : i32
    %c0 = arith.constant 0 : index
    %c0_0 = arith.constant 0 : index
    %2 = vector.load %arg4[%c0, %c0_0] : memref<1x128xf32, #tpu.memory_space<vmem>>, vector<1x128xf32>
    %3 = vector.shape_cast %2 : vector<1x128xf32> to vector<1x128xf32>
    %4 = vector.broadcast %3 : vector<1x128xf32> to vector<8x128xf32>
    %c0_i32 = arith.constant 0 : i32
    %5 = arith.addi %1, %c0_i32 : i32
    %c0_1 = arith.constant 0 : index
    %6 = arith.index_cast %5 : i32 to index
    %c0_2 = arith.constant 0 : index
    %7 = vector.load %arg2[%c0_1, %6, %c0_2] : memref<1x18x72xf32, #tpu.memory_space<vmem>>, vector<1x8x72xf32>
    %8 = vector.shape_cast %7 : vector<1x8x72xf32> to vector<8x72xf32>
    %c0_3 = arith.constant 0 : index
    %c0_4 = arith.constant 0 : index
    %c0_5 = arith.constant 0 : index
    %9 = vector.load %arg3[%c0_3, %c0_4, %c0_5] : memref<3x72x128xf32, #tpu.memory_space<vmem>>, vector<1x72x128xf32>
    %10 = vector.shape_cast %9 : vector<1x72x128xf32> to vector<72x128xf32>
    %cst = arith.constant dense<0.000000e+00> : vector<8x128xf32>
    %11 = tpu.matmul %8, %10, %cst {dimension_numbers = #tpu.dot_dimension_numbers<[1], [0], [0], [1], [0, 0, 1, 1], [], []>} : vector<8x72xf32>, vector<72x128xf32>, vector<8x128xf32> -> vector<8x128xf32>
    %12 = arith.addf %4, %11 : vector<8x128xf32>
    %c1_i32 = arith.constant 1 : i32
    %13 = arith.addi %1, %c1_i32 : i32
    %c0_6 = arith.constant 0 : index
    %14 = arith.index_cast %13 : i32 to index
    %c0_7 = arith.constant 0 : index
    %15 = vector.load %arg2[%c0_6, %14, %c0_7] : memref<1x18x72xf32, #tpu.memory_space<vmem>>, vector<1x8x72xf32>
    %16 = vector.shape_cast %15 : vector<1x8x72xf32> to vector<8x72xf32>
    %c1 = arith.constant 1 : index
    %c0_8 = arith.constant 0 : index
    %c0_9 = arith.constant 0 : index
    %17 = vector.load %arg3[%c1, %c0_8, %c0_9] : memref<3x72x128xf32, #tpu.memory_space<vmem>>, vector<1x72x128xf32>
    %18 = vector.shape_cast %17 : vector<1x72x128xf32> to vector<72x128xf32>
    %cst_10 = arith.constant dense<0.000000e+00> : vector<8x128xf32>
    %19 = tpu.matmul %16, %18, %cst_10 {dimension_numbers = #tpu.dot_dimension_numbers<[1], [0], [0], [1], [0, 0, 1, 1], [], []>} : vector<8x72xf32>, vector<72x128xf32>, vector<8x128xf32> -> vector<8x128xf32>
    %20 = arith.addf %12, %19 : vector<8x128xf32>
    %c2_i32 = arith.constant 2 : i32
    %21 = arith.addi %1, %c2_i32 : i32
    %c0_11 = arith.constant 0 : index
    %22 = arith.index_cast %21 : i32 to index
    %c0_12 = arith.constant 0 : index
    %23 = vector.load %arg2[%c0_11, %22, %c0_12] : memref<1x18x72xf32, #tpu.memory_space<vmem>>, vector<1x8x72xf32>
    %24 = vector.shape_cast %23 : vector<1x8x72xf32> to vector<8x72xf32>
    %c2 = arith.constant 2 : index
    %c0_13 = arith.constant 0 : index
    %c0_14 = arith.constant 0 : index
    %25 = vector.load %arg3[%c2, %c0_13, %c0_14] : memref<3x72x128xf32, #tpu.memory_space<vmem>>, vector<1x72x128xf32>
    %26 = vector.shape_cast %25 : vector<1x72x128xf32> to vector<72x128xf32>
    %cst_15 = arith.constant dense<0.000000e+00> : vector<8x128xf32>
    %27 = tpu.matmul %24, %26, %cst_15 {dimension_numbers = #tpu.dot_dimension_numbers<[1], [0], [0], [1], [0, 0, 1, 1], [], []>} : vector<8x72xf32>, vector<72x128xf32>, vector<8x128xf32> -> vector<8x128xf32>
    %28 = arith.addf %20, %27 : vector<8x128xf32>
    %c0_16 = arith.constant 0 : index
    %c0_17 = arith.constant 0 : index
    %c0_18 = arith.constant 0 : index
    %29 = vector.load %arg5[%c0_16, %c0_17, %c0_18] : memref<1x8x128xf32, #tpu.memory_space<vmem>>, vector<1x8x128xf32>
    %30 = vector.shape_cast %29 : vector<1x8x128xf32> to vector<8x128xf32>
    %31 = vector.shape_cast %28 : vector<8x128xf32> to vector<1x8x128xf32>
    tpu.vector_store %arg5[%c0_16, %c0_17, %c0_18], %31 {strides = array<i32>} : memref<1x8x128xf32, #tpu.memory_space<vmem>>, vector<1x8x128xf32>,
    return
  }
  func.func @transform_0(%arg0: i32, %arg1: i32) -> (i32, i32, i32) {
    %c0_i32 = arith.constant 0 : i32
    %c0_i32_0 = arith.constant 0 : i32
    %c0_i32_1 = arith.constant 0 : i32
    return %arg0, %c0_i32, %c0_i32_0 : i32, i32, i32
  }
  func.func @transform_1(%arg0: i32, %arg1: i32) -> (i32, i32, i32) {
    %c0_i32 = arith.constant 0 : i32
    %c0_i32_0 = arith.constant 0 : i32
    %c0_i32_1 = arith.constant 0 : i32
    %c0_i32_2 = arith.constant 0 : i32
    return %c0_i32, %c0_i32_0, %c0_i32_1 : i32, i32, i32
  }
  func.func @transform_2(%arg0: i32, %arg1: i32) -> (i32, i32) {
    %c0_i32 = arith.constant 0 : i32
    %c0_i32_0 = arith.constant 0 : i32
    %c0_i32_1 = arith.constant 0 : i32
    return %c0_i32, %c0_i32_0 : i32, i32
  }
  func.func @transform_3(%arg0: i32, %arg1: i32) -> (i32, i32, i32) {
    %c0_i32 = arith.constant 0 : i32
    %c0_i32_0 = arith.constant 0 : i32
    return %arg0, %arg1, %c0_i32 : i32, i32, i32
  }
}

</mosaic_0001>

<llo_original>
// kernel: tpu_custom_call.1
$region0: #{tpu_custom_call.1}
  #allocation0 [shape = 'u32[]', space=smem, size = 0x4, offset = 0x4, fixed_abs, tag = 'smem constant byte address 0x4 - core index']
  #allocation1 [shape = 'u32[72,128]{1,0:T(1,128)}', space=vmem, size = 0x9000, scoped, tag = 'internal scratch']
  %s0 = inlined_call_operand.vmem [shape: f32[2,18,72], index: 0, kind: input, shape index: {}]
  %s1 = inlined_call_operand.hbm [shape: f32[3,72,128], index: 1, kind: input, shape index: {}]
  %s2 = inlined_call_operand.vmem [shape: f32[1,128], index: 2, kind: input, shape index: {}]
  %s3 = inlined_call_operand.hbm [shape: f32[2,16,128], index: 3, kind: output, shape index: {}]
  %s4 = sld [smem:[#allocation0]]
  $region49: #{tpu_custom_call.1} parent=0
    _
  %s6 = ssub.s32 1, %s4
  %s7 = scalar_select 0, %s6, %s4
  $region1: #{tpu_custom_call.1} parent=0
    #allocation2 [shape = 'u8[110592]{0}', space=vmem, size = 0x1b000, scoped, tag = 'input window, operand 1, single buffered']
    #allocation3 [shape = 's32[2]{0}', space=sflag, size = 0x8, scoped, tag = 'scoped memory for tpu_custom_call.1']
    #allocation4 [shape = 's32[2]{0}', space=sflag, size = 0x8, scoped, tag = 'scoped memory for tpu_custom_call.1']
    #allocation5 [shape = 'u8[8192]{0}', space=vmem, size = 0x2000, scoped, tag = 'output window, operand 0']
    %8 = vsyncpa [#allocation3], 0
    %9 = vsyncpa [#allocation4], 0
    %s10 = scalar_lea.sflag [#allocation4], 1
    %11 = vsyncpa %s10, 0
    loop: start=0, step=1, limit=6
    $region2: #{tpu_custom_call.1} parent=1 // loop_pre_header
      _
    $region3: #{tpu_custom_call.1} parent=1 // loop_header
      %s13 = sphi 0, %s17
      %p14 = scmp.ge.s32.totalorder %s13, 6
      %s20 = sphi 0, %s32
      %s21 = sphi 0, %s28
      %s22 = sphi 0, %s20
      %s23 = sphi 0, %s21
      %s24 = sphi 0, %s22
      %s25 = sphi 0, %s23
      %s35 = sphi 0, %s37
      %s38 = sphi 0, %s35
      %s39 = sphi 0, %s38
      %s55 = sphi 0, %s39
      %s59 = sphi 0, %s59
      %s61 = sphi 0, %s59
      %s62 = sphi 0, %s61
      %s76 = sphi 0, %s62
      %s80 = sphi 0, %s80
      %s82 = sphi 0, %s80
      %s83 = sphi 0, %s82
      %s97 = sphi 0, %s83
      %s105 = sphi 0, %s107
      %s108 = sphi 0, %s105
      %s109 = sphi 0, %s108
      %s125 = sphi 0, %s109
    $region4: #{tpu_custom_call.1} parent=1 // loop_header_branch
      %16 = sbr.rel (%p14) target = $region8
    $region5: #{tpu_custom_call.1} parent=1 // loop_body
      %s18 = ssub.s32 %s13, 1
      %s19 = ssub.s32 %s13, 2
      %s26 = sadd.s32 1, %s21
      %p27 = scmp.ge.s32.totalorder %s26, 2
      %s28 = scalar_select %p27, 0, %s26
      %s29 = sadd.s32 1, %s20
      %s30 = scalar_select %p27, %s29, %s20
      %p31 = scmp.ge.s32.totalorder %s30, 2
      %s32 = scalar_select %p31, 0, %s30
      %s33 = ssub.s32 %s20, %s32
      %p34 = scmp.eq.s32.totalorder %s33, 0
      %s36 = sadd.s32 %s35, 1
      %s37 = scalar_select %p34, %s35, %s36
      %p40 = pneg %p34
      %p41 = scmp.eq.s32.totalorder %s13, 3
      %p42 = por %p40, %p41
      %p43 = scmp.ne.s32.totalorder %s35, %s38
      %p44 = scmp.eq.s32.totalorder %s13, 0
      %p45 = por %p43, %p44
      %p46 = scmp.ne.s32.totalorder %s35, %s38
      %p47 = scmp.eq.s32.totalorder %s18, 3
      %p48 = por %p46, %p47
      %p49 = scmp.ne.s32.totalorder %s38, %s39
      %p50 = scmp.eq.s32.totalorder %s18, 0
      %p51 = por %p49, %p50
      %p52 = scmp.ne.s32.totalorder %s38, %s39
      %p53 = scmp.eq.s32.totalorder %s19, 3
      %p54 = por %p52, %p53
      %p56 = scmp.ne.s32.totalorder %s39, %s55
      %p57 = scmp.eq.s32.totalorder %s19, 0
      %p58 = por %p56, %p57
      %s60 = sadd.s32 %s59, 1
      %p63 = scmp.eq.s32.totalorder %s13, 3
      %p64 = scmp.ne.s32.totalorder %s59, %s61
      %p65 = scmp.eq.s32.totalorder %s13, 0
      %p66 = por %p64, %p65
      %p67 = scmp.ne.s32.totalorder %s59, %s61
      %p68 = scmp.eq.s32.totalorder %s18, 3
      %p69 = por %p67, %p68
      %p70 = scmp.ne.s32.totalorder %s61, %s62
      %p71 = scmp.eq.s32.totalorder %s18, 0
      %p72 = por %p70, %p71
      %p73 = scmp.ne.s32.totalorder %s61, %s62
      %p74 = scmp.eq.s32.totalorder %s19, 3
      %p75 = por %p73, %p74
      %p77 = scmp.ne.s32.totalorder %s62, %s76
      %p78 = scmp.eq.s32.totalorder %s19, 0
      %p79 = por %p77, %p78
      %s81 = sadd.s32 %s80, 1
      %p84 = scmp.eq.s32.totalorder %s13, 3
      %p85 = scmp.ne.s32.totalorder %s80, %s82
      %p86 = scmp.eq.s32.totalorder %s13, 0
      %p87 = por %p85, %p86
      %p88 = scmp.ne.s32.totalorder %s80, %s82
      %p89 = scmp.eq.s32.totalorder %s18, 3
      %p90 = por %p88, %p89
      %p91 = scmp.ne.s32.totalorder %s82, %s83
      %p92 = scmp.eq.s32.totalorder %s18, 0
      %p93 = por %p91, %p92
      %p94 = scmp.ne.s32.totalorder %s82, %s83
      %p95 = scmp.eq.s32.totalorder %s19, 3
      %p96 = por %p94, %p95
      %p98 = scmp.ne.s32.totalorder %s83, %s97
      %p99 = scmp.eq.s32.totalorder %s19, 0
      %p100 = por %p98, %p99
      %s101 = ssub.s32 %s20, %s32
      %s102 = ssub.s32 %s21, %s28
      %s103 = sor.u32 %s101, %s102
      %p104 = scmp.eq.s32.totalorder %s103, 0
      %s106 = sadd.s32 %s105, 1
      %s107 = scalar_select %p104, %s105, %s106
      %p110 = pneg %p104
      %p111 = scmp.eq.s32.totalorder %s13, 3
      %p112 = por %p110, %p111
      %p113 = scmp.ne.s32.totalorder %s105, %s108
      %p114 = scmp.eq.s32.totalorder %s13, 0
      %p115 = por %p113, %p114
      %p116 = scmp.ne.s32.totalorder %s105, %s108
      %p117 = scmp.eq.s32.totalorder %s18, 3
      %p118 = por %p116, %p117
      %p119 = scmp.ne.s32.totalorder %s108, %s109
      %p120 = scmp.eq.s32.totalorder %s18, 0
      %p121 = por %p119, %p120
      %p122 = scmp.ne.s32.totalorder %s108, %s109
      %p123 = scmp.eq.s32.totalorder %s19, 3
      %p124 = por %p122, %p123
      %p126 = scmp.ne.s32.totalorder %s109, %s125
      %p127 = scmp.eq.s32.totalorder %s19, 0
      %p128 = por %p126, %p127
      %p129 = scmp.le.s32.totalorder 1, %s13
      %p130 = scmp.lt.s32.totalorder %s13, 5
      %p131 = pnand %p129, %p130
      %p132 = pneg %p131
      // Predicated region
      $region9: #{tpu_custom_call.1} parent=5 // pred_check
        _
      $region10: #{tpu_custom_call.1} parent=5 // pred_check_branch
        %134 = sbr.rel (%p131) target = $region12
      $region11: #{tpu_custom_call.1} parent=5 // pred_region
        %s135 = ssub.s32 %s13, 1
        // Predicated region
        $region13: #{tpu_custom_call.1} parent=11 // pred_check
          %p136 = pneg %p72
        $region14: #{tpu_custom_call.1} parent=11 // pred_check_branch
          %138 = sbr.rel (%p136) target = $region16
        $region15: #{tpu_custom_call.1} parent=11 // pred_region
          %140 = vsyncadd [#allocation3], 0
          %s141 = sshll.u32 %s1, 4
          %s142 = int_to_ptr.hbm [resolvable:$true] %s141
          %s143 = sshll.u32 [#allocation2], 4
          %s144 = int_to_ptr.vmem [resolvable:$true] %s143
          %149 = dma.hbm_to_vmem [thread:$0]  %s142, 3456, %s144, [#allocation3], 128, 128, 8
        $region16: #{tpu_custom_call.1} parent=11 // pred_fallthru
          _
        // Predicated region
        $region17: #{tpu_custom_call.1} parent=11 // pred_check
          %p150 = pneg %p93
        $region18: #{tpu_custom_call.1} parent=11 // pred_check_branch
          %152 = sbr.rel (%p150) target = $region20
        $region19: #{tpu_custom_call.1} parent=11 // pred_region
          _
        $region20: #{tpu_custom_call.1} parent=11 // pred_fallthru
          _
      $region12: #{tpu_custom_call.1} parent=5 // pred_fallthru
        _
      %p153 = scmp.lt.s32.totalorder %s13, 4
      // Predicated region
      $region21: #{tpu_custom_call.1} parent=5 // pred_check
        %p154 = pneg %p153
      $region22: #{tpu_custom_call.1} parent=5 // pred_check_branch
        %156 = sbr.rel (%p154) target = $region24
      $region23: #{tpu_custom_call.1} parent=5 // pred_region
        // Predicated region
        $region25: #{tpu_custom_call.1} parent=23 // pred_check
          %p157 = pneg %p45
        $region26: #{tpu_custom_call.1} parent=23 // pred_check_branch
          %159 = sbr.rel (%p157) target = $region28
        $region27: #{tpu_custom_call.1} parent=23 // pred_region
          %p160 = scmp.lt.s32.totalorder %s20, 1
          %s161 = scalar_select %p160, %s20, 1
          %s162 = smul.addr %s161, 3
          %s163 = smul.addr %s162, 8
          %s164 = scalar_lea.vmem %s0, %s163
        $region28: #{tpu_custom_call.1} parent=23 // pred_fallthru
          _
      $region24: #{tpu_custom_call.1} parent=5 // pred_fallthru
        _
      %p165 = scmp.le.s32.totalorder 1, %s13
      %p166 = scmp.lt.s32.totalorder %s13, 5
      %p167 = pnand %p165, %p166
      %p168 = pneg %p167
      // Predicated region
      $region29: #{tpu_custom_call.1} parent=5 // pred_check
        _
      $region30: #{tpu_custom_call.1} parent=5 // pred_check_branch
        %170 = sbr.rel (%p167) target = $region32
      $region31: #{tpu_custom_call.1} parent=5 // pred_region
        %s171 = ssub.s32 %s13, 1
        // Predicated region
        $region33: #{tpu_custom_call.1} parent=31 // pred_check
          %p172 = pneg %p72
        $region34: #{tpu_custom_call.1} parent=31 // pred_check_branch
          %174 = sbr.rel (%p172) target = $region36
        $region35: #{tpu_custom_call.1} parent=31 // pred_region
          %176 = dma.done [#allocation3], 3456
        $region36: #{tpu_custom_call.1} parent=31 // pred_fallthru
          _
        %p177 = scmp.lt.s32.totalorder %s22, 1
        %s178 = scalar_select %p177, %s22, 1
        %s179 = smul.addr %s178, 3
        %s180 = smul.addr %s179, 8
        %s181 = scalar_lea.vmem %s0, %s180
        %p182 = pneg %p51
        %p183 = pneg %p48
        %p184 = pneg %p72
        %p185 = pneg %p69
        %p186 = pneg %p93
        %p187 = pneg %p90
        %p188 = pneg %p121
        %p189 = pneg %p118
        %s190 = sand.u32 %s108, 1
        %s191 = scalar_lea.sflag [#allocation4], %s190
        %s192 = sand.u32 %s108, 1
        %s193 = smul.addr %s192, 8
        %s194 = scalar_lea.vmem [#allocation5], %s193
        %p195 = scmp.lt.s32.totalorder %s22, 1
        %s196 = scalar_select %p195, %s22, 1
        %s197 = smul.addr %s196, 3
        %s198 = smul.addr %s197, 8
        %s199 = scalar_lea.vmem %s0, %s198
        %s200 = smul.u32 %s23, 8
        %v201 = vld [vmem:[%s2] sm:$0x1]
        %v203 = vperm.slane %v201, 0
        %s205 = scalar_lea.vmem %s199, %s200
        %v206 = vld [vmem:[%s205] sm:$0xff]
        %v207 = vld [vmem:[#allocation2] sm:$0xff]
        %v208 = vld [vmem:[#allocation2 + $0x8] sm:$0xff]
        %v209 = vld [vmem:[#allocation2 + $0x10] sm:$0xff]
        %v210 = vld [vmem:[#allocation2 + $0x18] sm:$0xff]
        %v211 = vld [vmem:[#allocation2 + $0x20] sm:$0xff]
        %v212 = vld [vmem:[#allocation2 + $0x28] sm:$0xff]
        %v213 = vld [vmem:[#allocation2 + $0x30] sm:$0xff]
        %v214 = vld [vmem:[#allocation2 + $0x38] sm:$0xff]
        %v215 = vld [vmem:[#allocation2 + $0x40] sm:$0xff]
        %vm216 = vcmask 588800
        %v218 = vsel %vm216, %v206, 0
        %220 = vmatpush.msra.mxu0 0.0
        %221 = vmatpush.msra.mxu0 0.0
        %222 = vmatpush.msra.mxu0 0.0
        %223 = vmatpush.msra.mxu0 0.0
        %224 = vmatpush.msra.mxu0 0.0
        %225 = vmatpush.msra.mxu0 0.0
        %226 = vmatpush.msra.mxu0 0.0
        %227 = vmatpush.msra.mxu0 %v215
        %228 = vmatpush.msra.mxu0 %v214
        %229 = vmatpush.msra.mxu0 %v213
        %230 = vmatpush.msra.mxu0 %v212
        %231 = vmatpush.msra.mxu0 %v211
        %232 = vmatpush.msra.mxu0 %v210
        %233 = vmatpush.msra.mxu0 %v209
        %234 = vmatpush.msra.mxu0 %v208
        %235 = vmatpush.msra.mxu0 %v207
        %236 = vmatmul.f32.gmra.mxu0 %v218
        %v237 = vpop.f32.mrf.mxu0
        %v238 = vadd.f32 0.0, %v237
        %239 = vdwg.mxu0
        %v240 = vadd.f32 %v203, %v238
        %s241 = sadd.s32 %s200, 1
        %s242 = scalar_lea.vmem %s199, %s241
        %v243 = vld [vmem:[%s242] sm:$0xff]
        %s244 = scalar_lea.vmem [#allocation2], 72
        %v245 = vld [vmem:[%s244] sm:$0xff]
        %v246 = vld [vmem:[%s244 + $0x8] sm:$0xff]
        %v247 = vld [vmem:[%s244 + $0x10] sm:$0xff]
        %v248 = vld [vmem:[%s244 + $0x18] sm:$0xff]
        %v249 = vld [vmem:[%s244 + $0x20] sm:$0xff]
        %v250 = vld [vmem:[%s244 + $0x28] sm:$0xff]
        %v251 = vld [vmem:[%s244 + $0x30] sm:$0xff]
        %v252 = vld [vmem:[%s244 + $0x38] sm:$0xff]
        %v253 = vld [vmem:[%s244 + $0x40] sm:$0xff]
        %v255 = vsel %vm216, %v243, 0
        %257 = vmatpush.msra.mxu0 0.0
        %258 = vmatpush.msra.mxu0 0.0
        %259 = vmatpush.msra.mxu0 0.0
        %260 = vmatpush.msra.mxu0 0.0
        %261 = vmatpush.msra.mxu0 0.0
        %262 = vmatpush.msra.mxu0 0.0
        %263 = vmatpush.msra.mxu0 0.0
        %264 = vmatpush.msra.mxu0 %v253
        %265 = vmatpush.msra.mxu0 %v252
        %266 = vmatpush.msra.mxu0 %v251
        %267 = vmatpush.msra.mxu0 %v250
        %268 = vmatpush.msra.mxu0 %v249
        %269 = vmatpush.msra.mxu0 %v248
        %270 = vmatpush.msra.mxu0 %v247
        %271 = vmatpush.msra.mxu0 %v246
        %272 = vmatpush.msra.mxu0 %v245
        %273 = vmatmul.f32.gmra.mxu0 %v255
        %v274 = vpop.f32.mrf.mxu0
        %v275 = vadd.f32 0.0, %v274
        %276 = vdwg.mxu0
        %v277 = vadd.f32 %v240, %v275
        %s278 = sadd.s32 %s200, 2
        %s279 = scalar_lea.vmem %s199, %s278
        %v280 = vld [vmem:[%s279] sm:$0xff]
        %s281 = scalar_lea.vmem [#allocation2], 144
        %v282 = vld [vmem:[%s281] sm:$0xff]
        %v283 = vld [vmem:[%s281 + $0x8] sm:$0xff]
        %v284 = vld [vmem:[%s281 + $0x10] sm:$0xff]
        %v285 = vld [vmem:[%s281 + $0x18] sm:$0xff]
        %v286 = vld [vmem:[%s281 + $0x20] sm:$0xff]
        %v287 = vld [vmem:[%s281 + $0x28] sm:$0xff]
        %v288 = vld [vmem:[%s281 + $0x30] sm:$0xff]
        %v289 = vld [vmem:[%s281 + $0x38] sm:$0xff]
        %v290 = vld [vmem:[%s281 + $0x40] sm:$0xff]
        %v292 = vsel %vm216, %v280, 0
        %294 = vmatpush.msra.mxu0 0.0
        %295 = vmatpush.msra.mxu0 0.0
        %296 = vmatpush.msra.mxu0 0.0
        %297 = vmatpush.msra.mxu0 0.0
        %298 = vmatpush.msra.mxu0 0.0
        %299 = vmatpush.msra.mxu0 0.0
        %300 = vmatpush.msra.mxu0 0.0
        %301 = vmatpush.msra.mxu0 %v290
        %302 = vmatpush.msra.mxu0 %v289
        %303 = vmatpush.msra.mxu0 %v288
        %304 = vmatpush.msra.mxu0 %v287
        %305 = vmatpush.msra.mxu0 %v286
        %306 = vmatpush.msra.mxu0 %v285
        %307 = vmatpush.msra.mxu0 %v284
        %308 = vmatpush.msra.mxu0 %v283
        %309 = vmatpush.msra.mxu0 %v282
        %310 = vmatmul.f32.gmra.mxu0 %v292
        %v311 = vpop.f32.mrf.mxu0
        %v312 = vadd.f32 0.0, %v311
        %313 = vdwg.mxu0
        %v314 = vadd.f32 %v277, %v312
        %315 = vst [vmem:[%s194] sm:$0xff] %v314
        %s316 = sand.u32 %s108, 1
        %s317 = scalar_lea.sflag [#allocation4], %s316
        %s318 = sand.u32 %s108, 1
        %s319 = smul.addr %s318, 8
        %s320 = scalar_lea.vmem [#allocation5], %s319
        // Predicated region
        $region37: #{tpu_custom_call.1} parent=31 // pred_check
          %p321 = pneg %p118
        $region38: #{tpu_custom_call.1} parent=31 // pred_check_branch
          %323 = sbr.rel (%p321) target = $region40
        $region39: #{tpu_custom_call.1} parent=31 // pred_region
          %325 = vsyncadd %s317, 0
          %s326 = smul.addr %s22, 2
          %s327 = sadd.s32 %s23, %s326
          %s328 = smul.addr %s327, 8
          %s329 = scalar_lea.hbm %s3, %s328
          %s331 = sshll.u32 %s320, 4
          %s332 = int_to_ptr.vmem [resolvable:$true] %s331
          %s333 = sshll.u32 %s329, 4
          %s334 = int_to_ptr.hbm [resolvable:$true] %s333
          %336 = dma.vmem_to_hbm [thread:$0]  %s332, 128, %s334, %s317
        $region40: #{tpu_custom_call.1} parent=31 // pred_fallthru
          _
      $region32: #{tpu_custom_call.1} parent=5 // pred_fallthru
        _
      %p337 = scmp.le.s32.totalorder 2, %s13
      // Predicated region
      $region41: #{tpu_custom_call.1} parent=5 // pred_check
        %p338 = pneg %p337
      $region42: #{tpu_custom_call.1} parent=5 // pred_check_branch
        %340 = sbr.rel (%p338) target = $region44
      $region43: #{tpu_custom_call.1} parent=5 // pred_region
        %s341 = ssub.s32 %s13, 2
        // Predicated region
        $region45: #{tpu_custom_call.1} parent=43 // pred_check
          %p342 = pneg %p124
        $region46: #{tpu_custom_call.1} parent=43 // pred_check_branch
          %344 = sbr.rel (%p342) target = $region48
        $region47: #{tpu_custom_call.1} parent=43 // pred_region
          %s345 = sand.u32 %s109, 1
          %s346 = scalar_lea.sflag [#allocation4], %s345
          %s347 = sand.u32 %s109, 1
          %s348 = smul.addr %s347, 8
          %s349 = scalar_lea.vmem [#allocation5], %s348
          %351 = dma.done %s346, 128
        $region48: #{tpu_custom_call.1} parent=43 // pred_fallthru
          _
      $region44: #{tpu_custom_call.1} parent=5 // pred_fallthru
        _
    $region6: #{tpu_custom_call.1} parent=1 // loop_footer
      %s17 = sadd.s32 1, %s13
    $region7: #{tpu_custom_call.1} parent=1 // loop_footer_branch
      %12 = sbr.rel target = $region3
    $region8: #{tpu_custom_call.1} parent=1 // loop_exit
      _
    %352 = vsyncpa [#allocation3], 1
    %s353 = scalar_lea.sflag [#allocation3], 1
    %354 = vsyncpa %s353, 1
    %355 = vsyncpa [#allocation4], 1
    %s356 = scalar_lea.sflag [#allocation4], 1
    %357 = vsyncpa %s356, 1

</llo_original>
